<compile_context>
chip_gen: v5e
topology: v5e:2x2
jax: 0.10.0
libtpu: 0.0.40
codegen_flags: <defaults>
</compile_context>

<pallas_src>
import functools

import jax
import jax.numpy as jnp
from jax.experimental import pallas as pl
from jax.experimental.pallas import tpu as pltpu

GAMMA = 2  # compile-time exponent; lowered as an explicit square in the kernel


def _focal_loss_kernel(logits_ref, targets_ref, out_ref, acc_ref, *, n_valid, tile_n):
    i = pl.program_id(0)

    @pl.when(i == 0)
    def _init():
        acc_ref[0] = jnp.float32(0.0)

    x = logits_ref[...].astype(jnp.float32)        # (tile_n, C); math in f32
    t = targets_ref[...]                           # (tile_n, 1) int32

    # Numerically stable log-sum-exp (row-wise).
    m = jnp.max(x, axis=-1, keepdims=True)                               # (tile_n, 1)
    lse = jnp.log(jnp.sum(jnp.exp(x - m), axis=-1, keepdims=True)) + m   # (tile_n, 1)

    # Target-class logit: compare + select + cross-lane reduce (XLU), avoiding a
    # float one-hot multiply / MXU round-trip.
    col = jax.lax.broadcasted_iota(jnp.int32, x.shape, 1)                # (tile_n, C)
    tgt_logit = jnp.sum(jnp.where(col == t, x, 0.0), axis=-1, keepdims=True)

    ce = jnp.maximum(lse - tgt_logit, 0.0)   # clamp ULP-negative ce so pt <= 1
    pt = jnp.exp(-ce)                        # EUP transcendental (free slot)
    w = 1.0 - pt
    focal = w * w * ce                       # gamma = 2 -> two VPU muls, no pow

    # Mask rows beyond the true batch size (wrapper pads N up to a tile multiple).
    row = jax.lax.broadcasted_iota(jnp.int32, (tile_n, 1), 0) + i * tile_n
    focal = jnp.where(row < n_valid, focal, 0.0)

    acc_ref[0] += jnp.sum(focal)

    @pl.when(i == pl.num_programs(0) - 1)
    def _finalize():
        out_ref[0, 0] = acc_ref[0] / jnp.float32(n_valid)


def focal_loss(logits, targets, *, tile_n=None):
    """logits: (N, C) float (f32 or bf16), targets: (N,) int class ids -> scalar f32."""
    n, c = logits.shape
    targets2d = targets.reshape(n, 1).astype(jnp.int32)

    if tile_n is None:
        # Cap the logits tile at ~4 MiB (~8 MiB double-buffered) so it fits
        # comfortably under the scoped-VMEM default on every generation
        # (16 MiB v5e, 32 MiB v6e/v7x) while pipelining near the HBM roofline.
        bytes_per_row = c * jnp.dtype(logits.dtype).itemsize
        tile_n = (4 * 1024 * 1024) // max(bytes_per_row, 1)
        tile_n = max(8, min(1024, (tile_n // 8) * 8))
    # Never make the tile larger than the (8-row padded) batch itself; keep it
    # a multiple of 8 to satisfy the sublane constraint.
    tile_n = min(tile_n, max(8, -(-n // 8) * 8))
    tile_n = max(8, (tile_n // 8) * 8)

    num_tiles = pl.cdiv(n, tile_n)
    n_pad = num_tiles * tile_n
    if n_pad != n:
        logits = jnp.pad(logits, ((0, n_pad - n), (0, 0)))
        targets2d = jnp.pad(targets2d, ((0, n_pad - n), (0, 0)))

    kernel = functools.partial(_focal_loss_kernel, n_valid=n, tile_n=tile_n)

    out = pl.pallas_call(
        kernel,
        out_shape=jax.ShapeDtypeStruct((1, 1), jnp.float32),
        grid_spec=pltpu.PrefetchScalarGridSpec(
            num_scalar_prefetch=0,
            grid=(num_tiles,),
            in_specs=[
                pl.BlockSpec((tile_n, c), lambda i: (i, 0)),
                pl.BlockSpec((tile_n, 1), lambda i: (i, 0)),
            ],
            # Scalar result lives in SMEM: no masked (1,1) vector store / tiny
            # per-step DMA competing with the logits stream.
            out_specs=pl.BlockSpec(memory_space=pltpu.MemorySpace.SMEM),
            scratch_shapes=[pltpu.SMEM((1,), jnp.float32)],
        ),
        compiler_params=pltpu.CompilerParams(
            # Single grid axis carries the running-sum accumulator.
            dimension_semantics=("arbitrary",),
        ),
    )(logits, targets2d)
    return out[0, 0]


def _focal_loss_ref(logits, targets, gamma=GAMMA):
    # Pure-JAX reference for sanity checking.
    x = logits.astype(jnp.float32)
    lse = jax.nn.logsumexp(x, axis=-1)
    tgt = jnp.take_along_axis(x, targets[:, None], axis=-1)[:, 0]
    ce = lse - tgt
    pt = jnp.exp(-ce)
    return jnp.mean(((1.0 - pt) ** gamma) * ce)


# TODO(synk): on v7x, split the reduction across both TensorCores
# (grid=(2, tiles), dimension_semantics=("parallel", "arbitrary"), per-core
# partial-sum output reduced in the wrapper) for ~2x effective HBM bandwidth.

if __name__ == "__main__":
    key = jax.random.PRNGKey(0)
    k1, k2, k3, k4 = jax.random.split(key, 4)

    # Case 1: small aligned batch (single tile).
    N1, C1 = 8, 32
    logits1 = jax.random.normal(k1, (N1, C1), dtype=jnp.float32)
    targets1 = jax.random.randint(k2, (N1,), 0, C1, dtype=jnp.int32)
    loss1 = jax.block_until_ready(focal_loss(logits1, targets1))
    ref1 = _focal_loss_ref(logits1, targets1)
    assert jnp.allclose(loss1, ref1, rtol=1e-5, atol=1e-5), (loss1, ref1)

    # Case 2: ragged batch with a forced multi-tile grid (exercises the
    # cross-step accumulator and padded-row masking).
    N2, C2 = 35, 48
    logits2 = jax.random.normal(k3, (N2, C2), dtype=jnp.float32)
    targets2 = jax.random.randint(k4, (N2,), 0, C2, dtype=jnp.int32)
    loss2 = jax.block_until_ready(focal_loss(logits2, targets2, tile_n=8))
    ref2 = _focal_loss_ref(logits2, targets2)
    assert jnp.allclose(loss2, ref2, rtol=1e-5, atol=1e-5), (loss2, ref2)

    print("KERNEL_OK")
</pallas_src>

<mosaic_0001>
module attributes {stable_mosaic.version = 11 : i64} {
  func.func @_focal_loss_kernel(%arg0: i32, %arg1: memref<8x32xf32, #tpu.memory_space<vmem>>, %arg2: memref<8x1xi32, #tpu.memory_space<vmem>>, %arg3: memref<1x1xf32, #tpu.memory_space<smem>>, %arg4: memref<1xf32, #tpu.memory_space<smem>>) attributes {dimension_semantics = [#tpu.dimension_semantics<arbitrary>], iteration_bounds = array<i64: 1>, scalar_prefetch = 0 : i64, scratch_operands = 1 : i64, tpu.core_type = #tpu.core_type<tc>, window_params = [{transform_indices = @transform_0, window_bounds = array<i64: 8, 32>}, {transform_indices = @transform_1, window_bounds = array<i64: 8, 1>}, {transform_indices = @transform_2, window_bounds = array<i64: 1, 1>}]} {
    %c0_i32 = arith.constant 0 : i32
    %0 = arith.cmpi eq, %arg0, %c0_i32 : i32
    %1 = arith.extui %0 : i1 to i32
    %c0_i32_0 = arith.constant 0 : i32
    %2 = arith.cmpi ne, %1, %c0_i32_0 : i32
    scf.if %2 {
      %cst_17 = arith.constant 0.000000e+00 : f32
      %c0_18 = arith.constant 0 : index
      %49 = memref.load %arg4[%c0_18] : memref<1xf32, #tpu.memory_space<smem>>
      memref.store %cst_17, %arg4[%c0_18] : memref<1xf32, #tpu.memory_space<smem>>
    } else {
    }
    %c0 = arith.constant 0 : index
    %c0_1 = arith.constant 0 : index
    %3 = vector.load %arg1[%c0, %c0_1] : memref<8x32xf32, #tpu.memory_space<vmem>>, vector<8x32xf32>
    %c0_2 = arith.constant 0 : index
    %c0_3 = arith.constant 0 : index
    %4 = vector.load %arg2[%c0_2, %c0_3] : memref<8x1xi32, #tpu.memory_space<vmem>>, vector<8x1xi32>
    %cst = arith.constant dense<0xFF800000> : vector<8xf32>
    %5 = vector.multi_reduction <maximumf>, %3, %cst [1] : vector<8x32xf32> to vector<8xf32>
    %6 = vector.shape_cast %5 : vector<8xf32> to vector<8x1xf32>
    %7 = vector.broadcast %6 : vector<8x1xf32> to vector<8x32xf32>
    %8 = arith.subf %3, %7 : vector<8x32xf32>
    %9 = math.exp %8 : vector<8x32xf32>
    %cst_4 = arith.constant dense<0.000000e+00> : vector<8xf32>
    %10 = vector.multi_reduction <add>, %9, %cst_4 [1] : vector<8x32xf32> to vector<8xf32>
    %11 = vector.shape_cast %10 : vector<8xf32> to vector<8x1xf32>
    %12 = math.log %11 : vector<8x1xf32>
    %13 = arith.addf %12, %6 : vector<8x1xf32>
    %14 = tpu.iota {dimensions = array<i32: 1>} : vector<8x32xi32>
    %15 = vector.broadcast %4 : vector<8x1xi32> to vector<8x32xi32>
    %16 = arith.cmpi eq, %14, %15 : vector<8x32xi32>
    %cst_5 = arith.constant 0.000000e+00 : f32
    %17 = vector.broadcast %cst_5 : f32 to vector<8x32xf32>
    %18 = arith.select %16, %3, %17 : vector<8x32xi1>, vector<8x32xf32>
    %cst_6 = arith.constant dense<0.000000e+00> : vector<8xf32>
    %19 = vector.multi_reduction <add>, %18, %cst_6 [1] : vector<8x32xf32> to vector<8xf32>
    %20 = vector.shape_cast %19 : vector<8xf32> to vector<8x1xf32>
    %21 = arith.subf %13, %20 : vector<8x1xf32>
    %cst_7 = arith.constant 0.000000e+00 : f32
    %22 = vector.broadcast %cst_7 : f32 to vector<8x1xf32>
    %23 = arith.maximumf %21, %22 : vector<8x1xf32>
    %cst_8 = arith.constant 0.000000e+00 : f32
    %24 = vector.broadcast %cst_8 : f32 to vector<8x1xf32>
    %25 = arith.subf %24, %23 : vector<8x1xf32>
    %26 = math.exp %25 : vector<8x1xf32>
    %cst_9 = arith.constant 1.000000e+00 : f32
    %27 = vector.broadcast %cst_9 : f32 to vector<8x1xf32>
    %28 = arith.subf %27, %26 : vector<8x1xf32>
    %29 = arith.mulf %28, %28 : vector<8x1xf32>
    %30 = arith.mulf %29, %23 : vector<8x1xf32>
    %31 = tpu.iota {dimensions = array<i32: 0>} : vector<8x1xi32>
    %c8_i32 = arith.constant 8 : i32
    %32 = arith.muli %arg0, %c8_i32 : i32
    %33 = vector.broadcast %32 : i32 to vector<8x1xi32>
    %34 = arith.addi %31, %33 : vector<8x1xi32>
    %c8_i32_10 = arith.constant 8 : i32
    %35 = vector.broadcast %c8_i32_10 : i32 to vector<8x1xi32>
    %36 = arith.cmpi slt, %34, %35 : vector<8x1xi32>
    %cst_11 = arith.constant 0.000000e+00 : f32
    %37 = vector.broadcast %cst_11 : f32 to vector<8x1xf32>
    %38 = arith.select %36, %30, %37 : vector<8x1xi1>, vector<8x1xf32>
    %c0_12 = arith.constant 0 : index
    %39 = memref.load %arg4[%c0_12] : memref<1xf32, #tpu.memory_space<smem>>
    %40 = vector.shape_cast %38 : vector<8x1xf32> to vector<1x8x1xf32>
    %cst_13 = arith.constant dense<0.000000e+00> : vector<1xf32>
    %41 = vector.multi_reduction <add>, %40, %cst_13 [1, 2] : vector<1x8x1xf32> to vector<1xf32>
    %42 = vector.shape_cast %41 : vector<1xf32> to vector<1x1x1xf32>
    %43 = vector.extract %42[0, 0, 0] : f32 from vector<1x1x1xf32>
    %44 = arith.addf %39, %43 : f32
    %c0_14 = arith.constant 0 : index
    %45 = memref.load %arg4[%c0_14] : memref<1xf32, #tpu.memory_space<smem>>
    memref.store %44, %arg4[%c0_14] : memref<1xf32, #tpu.memory_space<smem>>
    %c0_i32_15 = arith.constant 0 : i32
    %46 = arith.cmpi eq, %arg0, %c0_i32_15 : i32
    %47 = arith.extui %46 : i1 to i32
    %c0_i32_16 = arith.constant 0 : i32
    %48 = arith.cmpi ne, %47, %c0_i32_16 : i32
    scf.if %48 {
      %c0_17 = arith.constant 0 : index
      %49 = memref.load %arg4[%c0_17] : memref<1xf32, #tpu.memory_space<smem>>
      %cst_18 = arith.constant 8.000000e+00 : f32
      %50 = arith.divf %49, %cst_18 : f32
      %c0_19 = arith.constant 0 : index
      %c0_20 = arith.constant 0 : index
      %51 = memref.load %arg3[%c0_19, %c0_20] : memref<1x1xf32, #tpu.memory_space<smem>>
      memref.store %50, %arg3[%c0_19, %c0_20] : memref<1x1xf32, #tpu.memory_space<smem>>
    } else {
    }
    return
  }
  func.func @transform_0(%arg0: i32) -> (i32, i32) {
    %c0_i32 = arith.constant 0 : i32
    %c0_i32_0 = arith.constant 0 : i32
    return %arg0, %c0_i32 : i32, i32
  }
  func.func @transform_1(%arg0: i32) -> (i32, i32) {
    %c0_i32 = arith.constant 0 : i32
    %c0_i32_0 = arith.constant 0 : i32
    return %arg0, %c0_i32 : i32, i32
  }
  func.func @transform_2(%arg0: i32) -> (i32, i32) {
    %c0_i32 = arith.constant 0 : i32
    %c0_i32_0 = arith.constant 0 : i32
    %c0_i32_1 = arith.constant 0 : i32
    return %c0_i32, %c0_i32_0 : i32, i32
  }
}

</mosaic_0001>

<llo_original>
// kernel: tpu_custom_call.1
$region0: #{tpu_custom_call.1}
  #allocation0 [shape = 'u32[]', space=smem, size = 0x4, offset = 0x4, fixed_abs, tag = 'smem constant byte address 0x4 - core index']
  #allocation1 [shape = 'u32[72,128]{1,0:T(1,128)}', space=vmem, size = 0x9000, scoped, tag = 'internal scratch']
  #allocation2 [shape = 'f32[1]{0:T(128)}', space=smem, size = 0x200, scoped, tag = 'scratch operand']
  %s0 = inlined_call_operand.vmem [shape: f32[8,32], index: 0, kind: input, shape index: {}]
  %s1 = inlined_call_operand.vmem [shape: s32[8,1], index: 1, kind: input, shape index: {}]
  %s2 = inlined_call_operand.hbm [shape: f32[1,1], index: 2, kind: output, shape index: {}]
  %s3 = sld [smem:[#allocation0]]
  $region26: #{tpu_custom_call.1} parent=0
    _
  %s5 = ssub.s32 1, %s3
  %s6 = scalar_select 0, %s5, %s3
  $region1: #{tpu_custom_call.1} parent=0
    #allocation3 [shape = 'u8[512]{0}', space=smem, size = 0x200, scoped, tag = 'output window, operand 0, single buffered']
    #allocation4 [shape = 's32[1]{0}', space=sflag, size = 0x4, scoped, tag = 'scoped memory for tpu_custom_call.1']
    %7 = vsyncpa [#allocation4], 0
    // Predicated region
    $region2: #{tpu_custom_call.1} parent=1 // pred_check
      _
    $region3: #{tpu_custom_call.1} parent=1 // pred_check_branch
      %9 = sbr.rel (0) target = $region5
    $region4: #{tpu_custom_call.1} parent=1 // pred_region
      _
    $region5: #{tpu_custom_call.1} parent=1 // pred_fallthru
      _
    // Predicated region
    $region6: #{tpu_custom_call.1} parent=1 // pred_check
      _
    $region7: #{tpu_custom_call.1} parent=1 // pred_check_branch
      %11 = sbr.rel (0) target = $region9
    $region8: #{tpu_custom_call.1} parent=1 // pred_region
      _
    $region9: #{tpu_custom_call.1} parent=1 // pred_fallthru
      _
    %p12 = scmp.eq.s32.totalorder 0, 0
    // Predicated region
    $region10: #{tpu_custom_call.1} parent=1 // pred_check
      %p13 = pneg %p12
    $region11: #{tpu_custom_call.1} parent=1 // pred_check_branch
      %15 = sbr.rel (%p13) target = $region13
    $region12: #{tpu_custom_call.1} parent=1 // pred_region
      %s16 = scalar_lea.smem [#allocation2], 0
      %17 = sst [smem:[%s16]] 0.0
    $region13: #{tpu_custom_call.1} parent=1 // pred_fallthru
      _
    %v18 = vld [vmem:[%s0] sm:$0xff]
    %v19 = vld [vmem:[%s1] sm:$0xff]
    %vm20 = vcmask 261120
    %v21 = vsel %vm20, %v18, -inf
    %22 = vmax.xlane.f32.xlu0 %v21
    %v23 = vpop.xlane.xlu0 %22
    %v24 = vsub.f32 %v18, %v23
    %v25 = vmul.f32 %v24, 1.442695
    %v26 = vpow.pop %v25
    %v27 = vsel %vm20, %v26, 0.0
    %28 = vadd.xlane.f32.xlu0 %v27
    %v29 = vpop.xlane.xlu0 %28
    %v30 = vlog2.pop %v29
    %v31 = vmul.f32 %v30, 0.6931472
    %v32 = vadd.f32 %v31, %v23
    %v33 = vlaneseq
    %v34 = vand.u32 %v33, 127
    %35 = vset.pattern.permute.xlu0 0
    %36 = vperm.xlu0 %35, %v19
    %v37 = vpop.permute.xlu0 %36
    %vm38 = vcmp.eq.s32.totalorder %v34, %v37
    %v39 = vsel %vm38, %v18, 0.0
    %v40 = vsel %vm20, %v39, 0.0
    %41 = vadd.xlane.f32.xlu0 %v40
    %v42 = vpop.xlane.xlu0 %41
    %v43 = vsub.f32 %v32, %v42
    %v44 = vmax.f32 %v43, 0.0
    %v45 = vsub.f32 0.0, %v44
    %v46 = vmul.f32 %v45, 1.442695
    %v47 = vpow.pop %v46
    %v48 = vsub.f32 1.0, %v47
    %v49 = vmul.f32 %v48, %v48
    %v50 = vmul.f32 %v49, %v44
    %v51 = vlaneseq
    %v52 = vshrl.u32 %v51, 7
    %s53 = smul.u32 0, 8
    %v54 = vstv %s53
    %v55 = vadd.s32 %v52, %v54
    %vm56 = vcmp.lt.s32.totalorder %v55, 8
    %v57 = vsel %vm56, %v50, 0.0
    %s58 = sld [smem:[#allocation2]]
    %vm59 = vcmask 7168
    %v60 = vsel %vm59, %v57, 0.0
    %61 = vadd.xlane.f32.xlu0 %v60
    %v62 = vpop.xlane.xlu0 %61
    %v63 = vrot.slane %v62, 4
    %v64 = vadd.f32 %v62, %v63
    %v65 = vrot.slane %v64, 2
    %v66 = vadd.f32 %v64, %v65
    %v67 = vrot.slane %v66, 1
    %v68 = vadd.f32 %v66, %v67
    %s69 = vtos %v68
    %s70 = sadd.f32 %s58, %s69
    %s71 = scalar_lea.smem [#allocation2], 0
    %72 = sst [smem:[%s71]] %s70
    // Predicated region
    $region14: #{tpu_custom_call.1} parent=1 // pred_check
      %p73 = pneg %p12
    $region15: #{tpu_custom_call.1} parent=1 // pred_check_branch
      %75 = sbr.rel (%p73) target = $region17
    $region16: #{tpu_custom_call.1} parent=1 // pred_region
      %s76 = sld [smem:[#allocation2]]
      %v77 = vrcp.pop 8.0
      %v78 = vmul.f32 8.0, %v77
      %v79 = vsub.f32 1.0, %v78
      %v80 = vmul.f32 %v77, %v79
      %v81 = vadd.f32 %v77, %v80
      %vm82 = vweird.f32 %v77
      %v83 = vsel %vm82, %v77, %v81
      %s84 = vtos %v83
      %s85 = smul.f32 %s76, %s84
      %s86 = scalar_lea.smem [#allocation3], 0
      %87 = sst [smem:[%s86]] %s85
    $region17: #{tpu_custom_call.1} parent=1 // pred_fallthru
      _
    // Predicated region
    $region18: #{tpu_custom_call.1} parent=1 // pred_check
      _
    $region19: #{tpu_custom_call.1} parent=1 // pred_check_branch
      %89 = sbr.rel (0) target = $region21
    $region20: #{tpu_custom_call.1} parent=1 // pred_region
      %91 = vsyncadd [#allocation4], 0
      %s93 = sshll.u32 %s2, 4
      %s94 = int_to_ptr.hbm [resolvable:$true] %s93
      %96 = dma.smem_to_hbm [#allocation3], 16, %s94, [#allocation4]
    $region21: #{tpu_custom_call.1} parent=1 // pred_fallthru
      _
    // Predicated region
    $region22: #{tpu_custom_call.1} parent=1 // pred_check
      _
    $region23: #{tpu_custom_call.1} parent=1 // pred_check_branch
      %98 = sbr.rel (0) target = $region25
    $region24: #{tpu_custom_call.1} parent=1 // pred_region
      %100 = dma.done [#allocation4], 16
    $region25: #{tpu_custom_call.1} parent=1 // pred_fallthru
      _
    %101 = sfence
    %102 = vsyncpa [#allocation4], 1

</llo_original>
